<compile_context>
chip_gen: v7x
topology: tpu7x:2x2x1
jax: 0.10.0
libtpu: 0.0.40
codegen_flags: <defaults>
</compile_context>

<pallas_src>
import functools

import jax
import jax.numpy as jnp
from jax.experimental import pallas as pl
from jax.experimental.pallas import tpu as pltpu


# ----------------------------------------------------------------------------
# helpers
# ----------------------------------------------------------------------------
def _round_up(x, m):
    return ((x + m - 1) // m) * m


def _apply_activation(f, activation):
    if activation == "SiLU":
        # exp -> EUP, approx reciprocal -> EUP; VPU stays free for the FMA work.
        return f * pl.reciprocal(1.0 + jnp.exp(-f), approx=True)
    if activation == "ReLU":
        return jnp.maximum(f, 0.0)
    # PyTorch module only prints a warning for unknown activations.
    return f


def _pick_batch_tile(B, K, N, x_bytes, budget_bytes=12 * 1024 * 1024, tb_max=512):
    """Batch tile: multiple of 8, capped so double-buffered tiles fit VMEM."""
    tb = min(tb_max, _round_up(B, 8))
    tb = _round_up(tb, 8)
    while tb > 8:
        footprint = (2 * K * N * 4            # weight (counted double-buffered)
                     + 2 * tb * K * x_bytes   # x tiles
                     + 4 * tb * N * 4         # feat / out tiles
                     + 4 * 8 * N * 4)         # bias / stats slabs
        if footprint <= budget_bytes:
            break
        tb = _round_up(tb // 2, 8)
    return tb


# ----------------------------------------------------------------------------
# kernels
# ----------------------------------------------------------------------------
def _linear_act_kernel(x_ref, w_ref, b_ref, out_ref, *, activation):
    """out = act(x @ W + b) for one batch tile (no batch-norm path)."""
    feat = jnp.dot(x_ref[...], w_ref[...], preferred_element_type=jnp.float32)
    feat = feat + b_ref[...]
    out_ref[...] = _apply_activation(feat, activation).astype(out_ref.dtype)


def _linear_stats_kernel(x_ref, w_ref, b_ref, feat_ref, stats_ref):
    """Pass 1 of the BN path: feat = x @ W + b, plus per-tile sum / sum-sq."""
    feat = jnp.dot(x_ref[...], w_ref[...], preferred_element_type=jnp.float32)
    feat = feat + b_ref[...]
    feat_ref[...] = feat

    n = feat.shape[1]
    s = jnp.sum(feat, axis=0, keepdims=True)           # [1, N]
    sq = jnp.sum(feat * feat, axis=0, keepdims=True)   # [1, N]
    rows = jax.lax.broadcasted_iota(jnp.int32, (8, n), 0)
    slab = jnp.where(rows == 0, s, jnp.where(rows == 1, sq, 0.0))
    stats_ref[0] = slab                                 # row0 = sum, row1 = sumsq


def _bn_act_kernel(feat_ref, scale_ref, shift_ref, out_ref, *, activation):
    """Pass 2 of the BN path: act(feat * scale + shift) with folded BN affine."""
    f = feat_ref[...] * scale_ref[...] + shift_ref[...]
    out_ref[...] = _apply_activation(f, activation).astype(out_ref.dtype)


# ----------------------------------------------------------------------------
# wrapper
# ----------------------------------------------------------------------------
def densenet_block(x, weight, bias, gamma=None, beta=None, *, activation="SiLU",
                   do_batch_norm=False, trainable=True, eps=1e-5, block_b=512):
    """DenseNetBlock forward.

    x: [B, C_in], weight: [C_out, C_in] (PyTorch layout), bias/gamma/beta: [C_out].
    Returns [B, C_out + C_in] = concat(act([bn](x @ W.T + b)), x).
    """
    B, C_in = x.shape
    C_out = weight.shape[0]

    K = _round_up(C_in, 128)          # lane-aligned contraction dim
    N = _round_up(C_out, 128)         # lane-aligned feature dim
    x_bytes = jnp.dtype(x.dtype).itemsize
    TB = _pick_batch_tile(B, K, N, x_bytes, tb_max=block_b)
    M = _round_up(B, TB)
    n_tiles = M // TB
    n_pad_rows = M - B

    # Layout plumbing in the wrapper (free): pad + pre-transpose the weight.
    xp = jnp.pad(x, ((0, M - B), (0, K - C_in)))
    wp = jnp.pad(weight.astype(jnp.float32).T, ((0, K - C_in), (0, N - C_out)))
    bp = jnp.pad(bias.astype(jnp.float32), (0, N - C_out)).reshape(1, N)

    cparams = pltpu.CompilerParams(
        dimension_semantics=("parallel",),          # megacore split on v7x
        vmem_limit_bytes=32 * 1024 * 1024,          # safe on v5e/v6e/v7x
    )

    x_spec = pl.BlockSpec((TB, K), lambda i: (i, 0))
    w_spec = pl.BlockSpec((K, N), lambda i: (0, 0))     # resident across grid
    b_spec = pl.BlockSpec((1, N), lambda i: (0, 0))

    use_bn = do_batch_norm and trainable
    # TODO(synk): `features.detach()` when trainable=False is a gradient-flow
    # directive only (jax.lax.stop_gradient equivalent); no forward effect.

    if not use_bn:
        feat_act = pl.pallas_call(
            functools.partial(_linear_act_kernel, activation=activation),
            out_shape=jax.ShapeDtypeStruct((M, N), x.dtype),
            grid=(n_tiles,),
            in_specs=[x_spec, w_spec, b_spec],
            out_specs=pl.BlockSpec((TB, N), lambda i: (i, 0)),
            compiler_params=cparams,
        )(xp, wp, bp)
    else:
        # ---- pass 1: linear + per-tile partial statistics ----
        feat, stats = pl.pallas_call(
            _linear_stats_kernel,
            out_shape=(jax.ShapeDtypeStruct((M, N), jnp.float32),
                       jax.ShapeDtypeStruct((n_tiles, 8, N), jnp.float32)),
            grid=(n_tiles,),
            in_specs=[x_spec, w_spec, b_spec],
            out_specs=(pl.BlockSpec((TB, N), lambda i: (i, 0)),
                       pl.BlockSpec((1, 8, N), lambda i: (i, 0, 0))),
            compiler_params=cparams,
        )(xp, wp, bp)

        # ---- tiny cross-tile reduction + BN affine fold (plain JAX) ----
        tot_sum = stats[:, 0, :].sum(axis=0)        # [N]
        tot_sq = stats[:, 1, :].sum(axis=0)         # [N]
        # Zero-padded batch rows contribute exactly `bias` per row; remove them.
        if n_pad_rows:
            bflat = bp[0]
            tot_sum = tot_sum - n_pad_rows * bflat
            tot_sq = tot_sq - n_pad_rows * bflat * bflat
        mean = tot_sum / B
        var = tot_sq / B - mean * mean              # biased var (BN training mode)
        gp = jnp.pad(gamma.astype(jnp.float32), (0, N - C_out), constant_values=1.0)
        bep = jnp.pad(beta.astype(jnp.float32), (0, N - C_out))
        scale = gp * jax.lax.rsqrt(var + eps)       # [N]
        shift = bep - mean * scale                  # [N]

        # ---- pass 2: fused normalize + activation ----
        feat_act = pl.pallas_call(
            functools.partial(_bn_act_kernel, activation=activation),
            out_shape=jax.ShapeDtypeStruct((M, N), x.dtype),
            grid=(n_tiles,),
            in_specs=[pl.BlockSpec((TB, N), lambda i: (i, 0)),
                      pl.BlockSpec((1, N), lambda i: (0, 0)),
                      pl.BlockSpec((1, N), lambda i: (0, 0))],
            out_specs=pl.BlockSpec((TB, N), lambda i: (i, 0)),
            compiler_params=cparams,
        )(feat, scale.reshape(1, N), shift.reshape(1, N))

    # DenseNet concat in the wrapper: the identity half never touches the kernel.
    features = feat_act[:B, :C_out]
    return jnp.concatenate([features, x], axis=1)


def _xavier_uniform(key, shape):
    fan_out, fan_in = shape
    bound = (6.0 / (fan_in + fan_out)) ** 0.5
    return jax.random.uniform(key, shape, jnp.float32, -bound, bound)


# ----------------------------------------------------------------------------
# demo / self-check
# ----------------------------------------------------------------------------
if __name__ == "__main__":
    # batch=8, input_nodes=32, output_nodes=32 -> output [8, 64]
    B, C_IN, C_OUT = 8, 32, 32
    key = jax.random.PRNGKey(0)
    kx, kw = jax.random.split(key)

    x = jax.random.normal(kx, (B, C_IN), jnp.float32)
    weight = _xavier_uniform(kw, (C_OUT, C_IN))     # xavier_uniform, like __init__
    bias = jnp.zeros((C_OUT,), jnp.float32)
    gamma = jnp.ones((C_OUT,), jnp.float32)
    beta = jnp.zeros((C_OUT,), jnp.float32)

    # Path 1: batch_norm=True, activation=SiLU, trainable=True
    out_bn = densenet_block(x, weight, bias, gamma, beta,
                            activation="SiLU", do_batch_norm=True, trainable=True)
    out_bn = jax.block_until_ready(out_bn)

    feat = x @ weight.T + bias
    mean = feat.mean(axis=0, keepdims=True)
    var = ((feat - mean) ** 2).mean(axis=0, keepdims=True)
    featn = (feat - mean) / jnp.sqrt(var + 1e-5) * gamma + beta
    ref_bn = jnp.concatenate([featn * jax.nn.sigmoid(featn), x], axis=1)
    assert out_bn.shape == (B, C_OUT + C_IN)
    # approx EUP reciprocal in SiLU -> slightly looser tolerance
    assert float(jnp.max(jnp.abs(out_bn - ref_bn))) < 5e-3

    # Path 2: batch_norm=False, activation=ReLU (gamma/beta never passed)
    out_relu = densenet_block(x, weight, bias,
                              activation="ReLU", do_batch_norm=False, trainable=True)
    out_relu = jax.block_until_ready(out_relu)
    ref_relu = jnp.concatenate([jnp.maximum(x @ weight.T + bias, 0.0), x], axis=1)
    assert out_relu.shape == (B, C_OUT + C_IN)
    assert float(jnp.max(jnp.abs(out_relu - ref_relu))) < 1e-4

    print("KERNEL_OK")
</pallas_src>

<mosaic_0001>
module attributes {stable_mosaic.version = 11 : i64} {
  func.func @_linear_stats_kernel(%arg0: i32, %arg1: memref<8x128xf32, #tpu.memory_space<vmem>>, %arg2: memref<128x128xf32, #tpu.memory_space<vmem>>, %arg3: memref<1x128xf32, #tpu.memory_space<vmem>>, %arg4: memref<8x128xf32, #tpu.memory_space<vmem>>, %arg5: memref<1x8x128xf32, #tpu.memory_space<vmem>>) attributes {dimension_semantics = [#tpu.dimension_semantics<parallel>], iteration_bounds = array<i64: 1>, scalar_prefetch = 0 : i64, scratch_operands = 0 : i64, tpu.core_type = #tpu.core_type<tc>, window_params = [{transform_indices = @transform_0, window_bounds = array<i64: 8, 128>}, {pipeline_mode = #tpu.pipeline_mode<synchronous>, transform_indices = @transform_1, window_bounds = array<i64: 128, 128>}, {pipeline_mode = #tpu.pipeline_mode<synchronous>, transform_indices = @transform_2, window_bounds = array<i64: 1, 128>}, {transform_indices = @transform_3, window_bounds = array<i64: 8, 128>}, {transform_indices = @transform_4, window_bounds = array<i64: 1, 8, 128>}]} {
    %c0 = arith.constant 0 : index
    %c0_0 = arith.constant 0 : index
    %0 = vector.load %arg1[%c0, %c0_0] : memref<8x128xf32, #tpu.memory_space<vmem>>, vector<8x128xf32>
    %c0_1 = arith.constant 0 : index
    %c0_2 = arith.constant 0 : index
    %1 = vector.load %arg2[%c0_1, %c0_2] : memref<128x128xf32, #tpu.memory_space<vmem>>, vector<128x128xf32>
    %cst = arith.constant dense<0.000000e+00> : vector<8x128xf32>
    %2 = tpu.matmul %0, %1, %cst {dimension_numbers = #tpu.dot_dimension_numbers<[1], [0], [0], [1], [0, 0, 1, 1], [], []>} : vector<8x128xf32>, vector<128x128xf32>, vector<8x128xf32> -> vector<8x128xf32>
    %c0_3 = arith.constant 0 : index
    %c0_4 = arith.constant 0 : index
    %3 = vector.load %arg3[%c0_3, %c0_4] : memref<1x128xf32, #tpu.memory_space<vmem>>, vector<1x128xf32>
    %4 = vector.broadcast %3 : vector<1x128xf32> to vector<8x128xf32>
    %5 = arith.addf %2, %4 : vector<8x128xf32>
    %c0_5 = arith.constant 0 : index
    %c0_6 = arith.constant 0 : index
    %6 = vector.load %arg4[%c0_5, %c0_6] : memref<8x128xf32, #tpu.memory_space<vmem>>, vector<8x128xf32>
    tpu.vector_store %arg4[%c0_5, %c0_6], %5 {strides = array<i32>} : memref<8x128xf32, #tpu.memory_space<vmem>>, vector<8x128xf32>,
    %cst_7 = arith.constant dense<0.000000e+00> : vector<128xf32>
    %7 = vector.multi_reduction <add>, %5, %cst_7 [0] : vector<8x128xf32> to vector<128xf32>
    %8 = vector.shape_cast %7 : vector<128xf32> to vector<1x128xf32>
    %9 = arith.mulf %5, %5 : vector<8x128xf32>
    %cst_8 = arith.constant dense<0.000000e+00> : vector<128xf32>
    %10 = vector.multi_reduction <add>, %9, %cst_8 [0] : vector<8x128xf32> to vector<128xf32>
    %11 = vector.shape_cast %10 : vector<128xf32> to vector<1x128xf32>
    %12 = tpu.iota {dimensions = array<i32: 0>} : vector<8x128xi32>
    %c0_i32 = arith.constant 0 : i32
    %13 = vector.broadcast %c0_i32 : i32 to vector<8x128xi32>
    %14 = arith.cmpi eq, %12, %13 : vector<8x128xi32>
    %c1_i32 = arith.constant 1 : i32
    %15 = vector.broadcast %c1_i32 : i32 to vector<8x128xi32>
    %16 = arith.cmpi eq, %12, %15 : vector<8x128xi32>
    %cst_9 = arith.constant 0.000000e+00 : f32
    %17 = vector.shape_cast %11 : vector<1x128xf32> to vector<1x128xf32>
    %18 = vector.broadcast %17 : vector<1x128xf32> to vector<8x128xf32>
    %19 = vector.broadcast %cst_9 : f32 to vector<8x128xf32>
    %20 = arith.select %16, %18, %19 : vector<8x128xi1>, vector<8x128xf32>
    %21 = vector.shape_cast %8 : vector<1x128xf32> to vector<1x128xf32>
    %22 = vector.broadcast %21 : vector<1x128xf32> to vector<8x128xf32>
    %23 = arith.select %14, %22, %20 : vector<8x128xi1>, vector<8x128xf32>
    %c0_10 = arith.constant 0 : index
    %c0_11 = arith.constant 0 : index
    %c0_12 = arith.constant 0 : index
    %24 = vector.load %arg5[%c0_10, %c0_11, %c0_12] : memref<1x8x128xf32, #tpu.memory_space<vmem>>, vector<1x8x128xf32>
    %25 = vector.shape_cast %24 : vector<1x8x128xf32> to vector<8x128xf32>
    %26 = vector.shape_cast %23 : vector<8x128xf32> to vector<1x8x128xf32>
    tpu.vector_store %arg5[%c0_10, %c0_11, %c0_12], %26 {strides = array<i32>} : memref<1x8x128xf32, #tpu.memory_space<vmem>>, vector<1x8x128xf32>,
    return
  }
  func.func @transform_0(%arg0: i32) -> (i32, i32) {
    %c0_i32 = arith.constant 0 : i32
    %c0_i32_0 = arith.constant 0 : i32
    return %arg0, %c0_i32 : i32, i32
  }
  func.func @transform_1(%arg0: i32) -> (i32, i32) {
    %c0_i32 = arith.constant 0 : i32
    %c0_i32_0 = arith.constant 0 : i32
    %c0_i32_1 = arith.constant 0 : i32
    return %c0_i32, %c0_i32_0 : i32, i32
  }
  func.func @transform_2(%arg0: i32) -> (i32, i32) {
    %c0_i32 = arith.constant 0 : i32
    %c0_i32_0 = arith.constant 0 : i32
    %c0_i32_1 = arith.constant 0 : i32
    return %c0_i32, %c0_i32_0 : i32, i32
  }
  func.func @transform_3(%arg0: i32) -> (i32, i32) {
    %c0_i32 = arith.constant 0 : i32
    %c0_i32_0 = arith.constant 0 : i32
    return %arg0, %c0_i32 : i32, i32
  }
  func.func @transform_4(%arg0: i32) -> (i32, i32, i32) {
    %c0_i32 = arith.constant 0 : i32
    %c0_i32_0 = arith.constant 0 : i32
    %c0_i32_1 = arith.constant 0 : i32
    return %arg0, %c0_i32, %c0_i32_0 : i32, i32, i32
  }
}

</mosaic_0001>

<llo_original>
// kernel: tpu_custom_call.1
$region0: #{tpu_custom_call.1}
  #allocation0 [shape = 'u32[]', space=smem, size = 0x4, offset = 0x4, fixed_abs, tag = 'smem constant byte address 0x4 - core index']
  #allocation1 [shape = 'u32[144,128]{1,0:T(1,128)}', space=vmem, size = 0x12000, scoped, tag = 'internal scratch']
  %s0 = inlined_call_operand.hbm [shape: f32[8,128], index: 0, kind: input, shape index: {}]
  %s1 = inlined_call_operand.hbm [shape: f32[128,128], index: 1, kind: input, shape index: {}]
  %s2 = inlined_call_operand.vmem [shape: f32[1,128], index: 2, kind: input, shape index: {}]
  %s3 = inlined_call_operand.hbm [shape: f32[8,128], index: 3, kind: output, shape index: {0}]
  %s4 = inlined_call_operand.hbm [shape: f32[1,8,128], index: 4, kind: output, shape index: {1}]
  %5 = xla_tuple %s3, %s4
  %s6 = sld [smem:[#allocation0]]
  $region38: #{tpu_custom_call.1} parent=0
    _
  %s8 = ssub.s32 1, %s6
  %s9 = scalar_select 0, %s8, %s6
  $region1: #{tpu_custom_call.1} parent=0
    #allocation2 [shape = 'u8[4096]{0}', space=vmem, size = 0x1000, scoped, tag = 'input window, operand 0, single buffered']
    #allocation3 [shape = 's32[1]{0}', space=sflag, size = 0x4, scoped, tag = 'scoped memory for tpu_custom_call.1']
    #allocation4 [shape = 's32[1]{0}', space=sflag, size = 0x4, scoped, tag = 'scoped memory for tpu_custom_call.1']
    #allocation5 [shape = 'u8[65536]{0}', space=vmem, size = 0x10000, scoped, tag = 'input window, operand 1, single buffered']
    #allocation6 [shape = 's32[1]{0}', space=sflag, size = 0x4, scoped, tag = 'scoped memory for tpu_custom_call.1']
    #allocation7 [shape = 'u8[4096]{0}', space=vmem, size = 0x1000, scoped, tag = 'output window, operand 0, single buffered']
    #allocation8 [shape = 'u8[4096]{0}', space=vmem, size = 0x1000, scoped, tag = 'output window, operand 1, single buffered']
    #allocation9 [shape = 's32[1]{0}', space=sflag, size = 0x4, scoped, tag = 'scoped memory for tpu_custom_call.1']
    %10 = vsyncpa [#allocation3], 0
    %11 = vsyncpa [#allocation6], 0
    %12 = vsyncpa [#allocation4], 0
    %13 = vsyncpa [#allocation9], 0
    // Predicated region
    $region2: #{tpu_custom_call.1} parent=1 // pred_check
      _
    $region3: #{tpu_custom_call.1} parent=1 // pred_check_branch
      %15 = sbr.rel (0) target = $region5
    $region4: #{tpu_custom_call.1} parent=1 // pred_region
      %s17 = ssub.s32 128, 128
      %18 = vsyncadd [#allocation3], %s17
      %s20 = sshll.u32 [#allocation2], 4
      %s21 = int_to_ptr.vmem [resolvable:$true] %s20
      %23 = dma.hbm_to_vmem [thread:$0]  %s0, 128, %s21, [#allocation3]
    $region5: #{tpu_custom_call.1} parent=1 // pred_fallthru
      _
    // Predicated region
    $region6: #{tpu_custom_call.1} parent=1 // pred_check
      _
    $region7: #{tpu_custom_call.1} parent=1 // pred_check_branch
      %25 = sbr.rel (0) target = $region9
    $region8: #{tpu_custom_call.1} parent=1 // pred_region
      %s27 = ssub.s32 2048, 2048
      %28 = vsyncadd [#allocation6], %s27
      %s29 = sshll.u32 [#allocation5], 4
      %s30 = int_to_ptr.vmem [resolvable:$true] %s29
      %35 = dma.hbm_to_vmem [thread:$0]  %s1, 2048, %s30, [#allocation6], 128, 128, 8
    $region9: #{tpu_custom_call.1} parent=1 // pred_fallthru
      _
    // Predicated region
    $region10: #{tpu_custom_call.1} parent=1 // pred_check
      _
    $region11: #{tpu_custom_call.1} parent=1 // pred_check_branch
      %37 = sbr.rel (0) target = $region13
    $region12: #{tpu_custom_call.1} parent=1 // pred_region
      _
    $region13: #{tpu_custom_call.1} parent=1 // pred_fallthru
      _
    // Predicated region
    $region14: #{tpu_custom_call.1} parent=1 // pred_check
      _
    $region15: #{tpu_custom_call.1} parent=1 // pred_check_branch
      %39 = sbr.rel (0) target = $region17
    $region16: #{tpu_custom_call.1} parent=1 // pred_region
      %40 = dma.done [#allocation3], 128
    $region17: #{tpu_custom_call.1} parent=1 // pred_fallthru
      _
    // Predicated region
    $region18: #{tpu_custom_call.1} parent=1 // pred_check
      _
    $region19: #{tpu_custom_call.1} parent=1 // pred_check_branch
      %42 = sbr.rel (0) target = $region21
    $region20: #{tpu_custom_call.1} parent=1 // pred_region
      %43 = dma.done [#allocation6], 2048
    $region21: #{tpu_custom_call.1} parent=1 // pred_fallthru
      _
    %v44 = vld [vmem:[#allocation2] sm:$0xff]
    %v45 = vld [vmem:[#allocation5] sm:$0xff]
    %v46 = vld [vmem:[#allocation5 + $0x8] sm:$0xff]
    %v47 = vld [vmem:[#allocation5 + $0x10] sm:$0xff]
    %v48 = vld [vmem:[#allocation5 + $0x18] sm:$0xff]
    %v49 = vld [vmem:[#allocation5 + $0x20] sm:$0xff]
    %v50 = vld [vmem:[#allocation5 + $0x28] sm:$0xff]
    %v51 = vld [vmem:[#allocation5 + $0x30] sm:$0xff]
    %v52 = vld [vmem:[#allocation5 + $0x38] sm:$0xff]
    %v53 = vld [vmem:[#allocation5 + $0x40] sm:$0xff]
    %v54 = vld [vmem:[#allocation5 + $0x48] sm:$0xff]
    %v55 = vld [vmem:[#allocation5 + $0x50] sm:$0xff]
    %v56 = vld [vmem:[#allocation5 + $0x58] sm:$0xff]
    %v57 = vld [vmem:[#allocation5 + $0x60] sm:$0xff]
    %v58 = vld [vmem:[#allocation5 + $0x68] sm:$0xff]
    %v59 = vld [vmem:[#allocation5 + $0x70] sm:$0xff]
    %v60 = vld [vmem:[#allocation5 + $0x78] sm:$0xff]
    %v61 = vld [vmem:[%s2] sm:$0x1]
    %v63 = vlaneseq
    %v64 = vshrl.u32 %v63, 7
    %v65 = vsub.s32 0, %v64
    %v66 = vrot.slane %v61, %v65
    %68 = vmatprep.subr.mxu0 0.0
    %69 = vmatpush1.msra.mxu0 %v45
    %70 = vmatprep.subr.mxu0 0.0
    %71 = vmatpush1.msra.mxu0 %v46
    %72 = vmatprep.subr.mxu0 0.0
    %73 = vmatpush1.msra.mxu0 %v47
    %74 = vmatprep.subr.mxu0 0.0
    %75 = vmatpush1.msra.mxu0 %v48
    %76 = vmatprep.subr.mxu0 0.0
    %77 = vmatpush1.msra.mxu0 %v49
    %78 = vmatprep.subr.mxu0 0.0
    %79 = vmatpush1.msra.mxu0 %v50
    %80 = vmatprep.subr.mxu0 0.0
    %81 = vmatpush1.msra.mxu0 %v51
    %82 = vmatprep.subr.mxu0 0.0
    %83 = vmatpush1.msra.mxu0 %v52
    %84 = vmatprep.subr.mxu0 0.0
    %85 = vmatpush1.msra.mxu0 %v53
    %86 = vmatprep.subr.mxu0 0.0
    %87 = vmatpush1.msra.mxu0 %v54
    %88 = vmatprep.subr.mxu0 0.0
    %89 = vmatpush1.msra.mxu0 %v55
    %90 = vmatprep.subr.mxu0 0.0
    %91 = vmatpush1.msra.mxu0 %v56
    %92 = vmatprep.subr.mxu0 0.0
    %93 = vmatpush1.msra.mxu0 %v57
    %94 = vmatprep.subr.mxu0 0.0
    %95 = vmatpush1.msra.mxu0 %v58
    %96 = vmatprep.subr.mxu0 0.0
    %97 = vmatpush1.msra.mxu0 %v59
    %98 = vmatprep.subr.mxu0 0.0
    %99 = vmatpush1.msra.mxu0 %v60
    %100 = vmatprep.subr.mxu0 0.0
    %101 = vmatpush1.msra.mxu0 0.0
    %102 = vmatprep.subr.mxu0 0.0
    %103 = vmatpush1.msra.mxu0 0.0
    %104 = vmatprep.subr.mxu0 0.0
    %105 = vmatpush1.msra.mxu0 0.0
    %106 = vmatprep.subr.mxu0 0.0
    %107 = vmatpush1.msra.mxu0 0.0
    %108 = vmatprep.subr.mxu0 0.0
    %109 = vmatpush1.msra.mxu0 0.0
    %110 = vmatprep.subr.mxu0 0.0
    %111 = vmatpush1.msra.mxu0 0.0
    %112 = vmatprep.subr.mxu0 0.0
    %113 = vmatpush1.msra.mxu0 0.0
    %114 = vmatprep.subr.mxu0 0.0
    %115 = vmatpush1.msra.mxu0 0.0
    %116 = vmatprep.subr.mxu0 0.0
    %117 = vmatpush1.msra.mxu0 0.0
    %118 = vmatprep.subr.mxu0 0.0
    %119 = vmatpush1.msra.mxu0 0.0
    %120 = vmatprep.subr.mxu0 0.0
    %121 = vmatpush1.msra.mxu0 0.0
    %122 = vmatprep.subr.mxu0 0.0
    %123 = vmatpush1.msra.mxu0 0.0
    %124 = vmatprep.subr.mxu0 0.0
    %125 = vmatpush1.msra.mxu0 0.0
    %126 = vmatprep.subr.mxu0 0.0
    %127 = vmatpush1.msra.mxu0 0.0
    %128 = vmatprep.subr.mxu0 0.0
    %129 = vmatpush1.msra.mxu0 0.0
    %130 = vmatprep.subr.mxu0 0.0
    %131 = vmatpush1.msra.mxu0 0.0
    %132 = vmatprep.mubr.f32.mxu0 0.0
    %133 = vmatmul.mubr.f32.gmra.mrb[0].mxu0 %v44
    %v134 = vpop.f32.mrb[0].mxu0
    %v135 = vadd.f32 %v66, %v134
    %v136 = vpop.f32.mrb[0].mxu0
    %137 = vdwg.mxu0
    %138 = vst [vmem:[#allocation7] sm:$0xff] %v135
    %v139 = vrot.slane %v135, 4
    %v140 = vadd.f32 %v135, %v139
    %v141 = vrot.slane %v140, 2
    %v142 = vadd.f32 %v140, %v141
    %v143 = vrot.slane %v142, 1
    %v144 = vadd.f32 %v142, %v143
    %v145 = vmul.f32 %v135, %v135
    %v146 = vrot.slane %v145, 4
    %v147 = vadd.f32 %v145, %v146
    %v148 = vrot.slane %v147, 2
    %v149 = vadd.f32 %v147, %v148
    %v150 = vrot.slane %v149, 1
    %v151 = vadd.f32 %v149, %v150
    %v152 = vlaneseq
    %v153 = vshrl.u32 %v152, 7
    %vm154 = vcmp.eq.s32.totalorder %v153, 0
    %vm155 = vcmp.eq.s32.totalorder %v153, 1
    %v156 = vsel %vm155, %v151, 0.0
    %v157 = vsel %vm154, %v144, %v156
    %158 = vst [vmem:[#allocation8] sm:$0xff] %v157
    // Predicated region
    $region22: #{tpu_custom_call.1} parent=1 // pred_check
      _
    $region23: #{tpu_custom_call.1} parent=1 // pred_check_branch
      %160 = sbr.rel (0) target = $region25
    $region24: #{tpu_custom_call.1} parent=1 // pred_region
      %s162 = ssub.s32 128, 128
      %163 = vsyncadd [#allocation4], %s162
      %s165 = sshll.u32 [#allocation7], 4
      %s166 = int_to_ptr.vmem [resolvable:$true] %s165
      %168 = dma.vmem_to_hbm [thread:$0]  %s166, 128, %s3, [#allocation4]
    $region25: #{tpu_custom_call.1} parent=1 // pred_fallthru
      _
    // Predicated region
    $region26: #{tpu_custom_call.1} parent=1 // pred_check
      _
    $region27: #{tpu_custom_call.1} parent=1 // pred_check_branch
      %170 = sbr.rel (0) target = $region29
    $region28: #{tpu_custom_call.1} parent=1 // pred_region
      %s172 = ssub.s32 128, 128
      %173 = vsyncadd [#allocation9], %s172
      %s175 = sshll.u32 [#allocation8], 4
      %s176 = int_to_ptr.vmem [resolvable:$true] %s175
      %178 = dma.vmem_to_hbm [thread:$0]  %s176, 128, %s4, [#allocation9]
    $region29: #{tpu_custom_call.1} parent=1 // pred_fallthru
      _
    // Predicated region
    $region30: #{tpu_custom_call.1} parent=1 // pred_check
      _
    $region31: #{tpu_custom_call.1} parent=1 // pred_check_branch
      %180 = sbr.rel (0) target = $region33
    $region32: #{tpu_custom_call.1} parent=1 // pred_region
      %181 = dma.done [#allocation4], 128
    $region33: #{tpu_custom_call.1} parent=1 // pred_fallthru
      _
    // Predicated region
    $region34: #{tpu_custom_call.1} parent=1 // pred_check
      _
    $region35: #{tpu_custom_call.1} parent=1 // pred_check_branch
      %183 = sbr.rel (0) target = $region37
    $region36: #{tpu_custom_call.1} parent=1 // pred_region
      %184 = dma.done [#allocation9], 128
    $region37: #{tpu_custom_call.1} parent=1 // pred_fallthru
      _
    %185 = vsyncpa [#allocation3], 1
    %186 = vsyncpa [#allocation6], 1
    %187 = vsyncpa [#allocation4], 1
    %188 = vsyncpa [#allocation9], 1

</llo_original>
